<compile_context>
chip_gen: v7x
topology: tpu7x:2x2x1
jax: 0.10.0
libtpu: 0.0.40
codegen_flags: <defaults>
</compile_context>

<pallas_src>
import functools

import jax
import jax.numpy as jnp
from jax import lax
from jax.experimental import pallas as pl
from jax.experimental.pallas import tpu as pltpu


def _contrastive_loss_kernel(a_ref, c0_ref, c1_ref, v1_ref, out_ref, m_sc, l_sc,
                             *, tm, tn, inv_temp):
    # a_ref  : (tm, dim)  anchor rows            (view0, row tile i)
    # c0_ref : (tn, dim)  contrast cols, 1st half (view0, col tile j)
    # c1_ref : (tn, dim)  contrast cols, 2nd half (view1, col tile j)
    # v1_ref : (tm, dim)  positive partners       (view1, row tile i)
    # out_ref: (tm, 1)    per-row loss
    i = pl.program_id(0)
    j = pl.program_id(1)

    @pl.when(j == 0)
    def _init():
        m_sc[...] = jnp.full_like(m_sc, -jnp.inf)
        l_sc[...] = jnp.zeros_like(l_sc)

    # Fold 1/temperature into the small anchor tile (stays in the input dtype);
    # matmuls run in the input dtype with f32 accumulation on the MXU.
    a = a_ref[...] * inv_temp
    dims = (((1,), (1,)), ((), ()))
    s0 = lax.dot_general(a, c0_ref[...], dims,
                         preferred_element_type=jnp.float32)   # (tm, tn)
    s1 = lax.dot_general(a, c1_ref[...], dims,
                         preferred_element_type=jnp.float32)   # (tm, tn)

    # Online softmax update (running max over all 2b columns, incl. the self term,
    # exactly like the PyTorch reference; the max cancels in the final loss).
    m_prev = m_sc[...]
    m_tile = jnp.maximum(jnp.max(s0, axis=1, keepdims=True),
                         jnp.max(s1, axis=1, keepdims=True))
    m_new = jnp.maximum(m_prev, m_tile)
    alpha = jnp.exp(m_prev - m_new)

    # Self-exclusion fused into the exp accumulation (no mask temporaries).
    # Self column only exists in the view0 half, at global col == global row.
    row_g = lax.broadcasted_iota(jnp.int32, (tm, tn), 0) + i * tm
    col_g = lax.broadcasted_iota(jnp.int32, (tm, tn), 1) + j * tn
    p0 = jnp.where(col_g == row_g, 0.0, jnp.exp(s0 - m_new))
    p1 = jnp.exp(s1 - m_new)

    l_sc[...] = (alpha * l_sc[...]
                 + jnp.sum(p0, axis=1, keepdims=True)
                 + jnp.sum(p1, axis=1, keepdims=True))
    m_sc[...] = m_new

    @pl.when(j == pl.num_programs(1) - 1)
    def _finalize():
        # Positive logit = <anchor_i, view1_i> / T via a rowwise dot (no pos mask).
        pos = jnp.sum(a.astype(jnp.float32) * v1_ref[...].astype(jnp.float32),
                      axis=1, keepdims=True)                   # (tm, 1)
        # loss_i = logsumexp_{j != i}(s_ij) - s_{i, i+b}
        out_ref[...] = m_sc[...] + jnp.log(l_sc[...]) - pos


def _pick_tile(n, candidates):
    for c in candidates:
        if n % c == 0:
            return c
    return n


def contrastive_loss(features, temperature):
    """features: (b, 2, dim) float array. Returns scalar f32 loss."""
    b, n, dim = features.shape
    assert n == 2

    view0 = features[:, 0, :]   # (b, dim)  anchors / first contrast half
    view1 = features[:, 1, :]   # (b, dim)  second contrast half / positives

    itemsize = jnp.dtype(features.dtype).itemsize
    tm = _pick_tile(b, (256, 128, 64, 32, 16, 8))
    tn = _pick_tile(b, (256, 128, 64, 32, 16, 8))

    # Keep double-buffered input tiles + f32 score tiles well under the smallest
    # (v7x) scoped-VMEM budget; shrink column then row tiles if needed.
    def _vmem_est(tm_, tn_):
        return 4 * (tm_ + tn_) * dim * itemsize + 2 * tm_ * tn_ * 4

    budget = 20 * 1024 * 1024
    while _vmem_est(tm, tn) > budget and tn >= 16 and (tn // 2) % 8 == 0:
        tn //= 2
    while _vmem_est(tm, tn) > budget and tm >= 16 and (tm // 2) % 8 == 0:
        tm //= 2

    num_row = b // tm
    num_col = b // tn
    inv_temp = 1.0 / float(temperature)

    kernel = functools.partial(
        _contrastive_loss_kernel, tm=tm, tn=tn, inv_temp=inv_temp
    )

    flops = 2 * b * (2 * b) * dim + 2 * b * dim
    transcendentals = 2 * b * b + 2 * b
    bytes_accessed = (num_row * 2 * b * dim + 2 * b * dim) * itemsize + b * 4

    per_row = pl.pallas_call(
        kernel,
        out_shape=jax.ShapeDtypeStruct((b, 1), jnp.float32),
        grid_spec=pltpu.PrefetchScalarGridSpec(
            num_scalar_prefetch=0,
            grid=(num_row, num_col),
            in_specs=[
                pl.BlockSpec((tm, dim), lambda i, j: (i, 0)),   # anchor rows (view0)
                pl.BlockSpec((tn, dim), lambda i, j: (j, 0)),   # contrast cols, view0 half
                pl.BlockSpec((tn, dim), lambda i, j: (j, 0)),   # contrast cols, view1 half
                pl.BlockSpec((tm, dim), lambda i, j: (i, 0)),   # positive partners (view1)
            ],
            out_specs=pl.BlockSpec((tm, 1), lambda i, j: (i, 0)),
            scratch_shapes=[
                pltpu.VMEM((tm, 1), jnp.float32),   # running max
                pltpu.VMEM((tm, 1), jnp.float32),   # running (masked) denominator
            ],
        ),
        compiler_params=pltpu.CompilerParams(
            dimension_semantics=("parallel", "arbitrary"),
            vmem_limit_bytes=32 * 1024 * 1024,
        ),
        cost_estimate=pl.CostEstimate(
            flops=flops,
            transcendentals=transcendentals,
            bytes_accessed=bytes_accessed,
        ),
    )(view0, view0, view1, view1)

    return jnp.mean(per_row)


def _reference_loss(features, temperature):
    # Pure-JAX transcription of the PyTorch module (for a parity check only).
    b = features.shape[0]
    anchor = features[:, 0].astype(jnp.float32)
    contrast = jnp.concatenate(
        [features[:, 0], features[:, 1]], axis=0).astype(jnp.float32)
    dp = anchor @ contrast.T / temperature
    logits_max = jnp.max(dp, axis=1, keepdims=True)
    logits = dp - logits_max
    mask = jnp.tile(jnp.eye(b, dtype=jnp.float32), (1, 2))
    logits_mask = 1.0 - jnp.eye(b, 2 * b, dtype=jnp.float32)
    mask = mask * logits_mask
    exp_logits = jnp.exp(logits) * logits_mask
    logits_positive = jnp.sum(mask * logits, axis=1, keepdims=True)
    return -jnp.mean(
        logits_positive - jnp.log(jnp.sum(exp_logits, axis=1, keepdims=True)))


if __name__ == "__main__":
    key = jax.random.PRNGKey(0)
    b, n, dim = 8, 2, 32
    features = jax.random.normal(key, (b, n, dim), dtype=jnp.float32)
    temperature = 0.5

    loss = contrastive_loss(features, temperature)
    jax.block_until_ready(loss)

    ref = _reference_loss(features, temperature)
    assert jnp.allclose(loss, ref, rtol=1e-4, atol=1e-4), (loss, ref)

    print("KERNEL_OK")
</pallas_src>

<mosaic_0001>
module attributes {stable_mosaic.version = 11 : i64} {
  func.func @_contrastive_loss_kernel(%arg0: i32, %arg1: i32, %arg2: memref<8x32xf32, #tpu.memory_space<vmem>>, %arg3: memref<8x32xf32, #tpu.memory_space<vmem>>, %arg4: memref<8x32xf32, #tpu.memory_space<vmem>>, %arg5: memref<8x32xf32, #tpu.memory_space<vmem>>, %arg6: memref<8x1xf32, #tpu.memory_space<vmem>>, %arg7: memref<8x1xf32, #tpu.memory_space<vmem>>, %arg8: memref<8x1xf32, #tpu.memory_space<vmem>>) attributes {dimension_semantics = [#tpu.dimension_semantics<parallel>, #tpu.dimension_semantics<arbitrary>], iteration_bounds = array<i64: 1, 1>, scalar_prefetch = 0 : i64, scratch_operands = 2 : i64, tpu.core_type = #tpu.core_type<tc>, window_params = [{transform_indices = @transform_0, window_bounds = array<i64: 8, 32>}, {transform_indices = @transform_1, window_bounds = array<i64: 8, 32>}, {transform_indices = @transform_2, window_bounds = array<i64: 8, 32>}, {transform_indices = @transform_3, window_bounds = array<i64: 8, 32>}, {transform_indices = @transform_4, window_bounds = array<i64: 8, 1>}]} {
    %c0_i32 = arith.constant 0 : i32
    %0 = arith.cmpi eq, %arg1, %c0_i32 : i32
    %1 = arith.extui %0 : i1 to i32
    %c0_i32_0 = arith.constant 0 : i32
    %2 = arith.cmpi ne, %1, %c0_i32_0 : i32
    scf.if %2 {
      %cst_24 = arith.constant 0xFF800000 : f32
      %49 = vector.broadcast %cst_24 : f32 to vector<8x1xf32>
      %c0_25 = arith.constant 0 : index
      %c0_26 = arith.constant 0 : index
      %50 = vector.load %arg7[%c0_25, %c0_26] : memref<8x1xf32, #tpu.memory_space<vmem>>, vector<8x1xf32>
      tpu.vector_store %arg7[%c0_25, %c0_26], %49 {strides = array<i32>} : memref<8x1xf32, #tpu.memory_space<vmem>>, vector<8x1xf32>,
      %cst_27 = arith.constant 0.000000e+00 : f32
      %51 = vector.broadcast %cst_27 : f32 to vector<8x1xf32>
      %c0_28 = arith.constant 0 : index
      %c0_29 = arith.constant 0 : index
      %52 = vector.load %arg8[%c0_28, %c0_29] : memref<8x1xf32, #tpu.memory_space<vmem>>, vector<8x1xf32>
      tpu.vector_store %arg8[%c0_28, %c0_29], %51 {strides = array<i32>} : memref<8x1xf32, #tpu.memory_space<vmem>>, vector<8x1xf32>,
    } else {
    }
    %c0 = arith.constant 0 : index
    %c0_1 = arith.constant 0 : index
    %3 = vector.load %arg2[%c0, %c0_1] : memref<8x32xf32, #tpu.memory_space<vmem>>, vector<8x32xf32>
    %cst = arith.constant 2.000000e+00 : f32
    %4 = vector.broadcast %cst : f32 to vector<8x32xf32>
    %5 = arith.mulf %3, %4 : vector<8x32xf32>
    %c0_2 = arith.constant 0 : index
    %c0_3 = arith.constant 0 : index
    %6 = vector.load %arg3[%c0_2, %c0_3] : memref<8x32xf32, #tpu.memory_space<vmem>>, vector<8x32xf32>
    %cst_4 = arith.constant dense<0.000000e+00> : vector<8x8xf32>
    %7 = tpu.matmul %5, %6, %cst_4 {dimension_numbers = #tpu.dot_dimension_numbers<[1], [1], [0], [0], [0, 0, 1, 0], [], []>} : vector<8x32xf32>, vector<8x32xf32>, vector<8x8xf32> -> vector<8x8xf32>
    %c0_5 = arith.constant 0 : index
    %c0_6 = arith.constant 0 : index
    %8 = vector.load %arg4[%c0_5, %c0_6] : memref<8x32xf32, #tpu.memory_space<vmem>>, vector<8x32xf32>
    %cst_7 = arith.constant dense<0.000000e+00> : vector<8x8xf32>
    %9 = tpu.matmul %5, %8, %cst_7 {dimension_numbers = #tpu.dot_dimension_numbers<[1], [1], [0], [0], [0, 0, 1, 0], [], []>} : vector<8x32xf32>, vector<8x32xf32>, vector<8x8xf32> -> vector<8x8xf32>
    %c0_8 = arith.constant 0 : index
    %c0_9 = arith.constant 0 : index
    %10 = vector.load %arg7[%c0_8, %c0_9] : memref<8x1xf32, #tpu.memory_space<vmem>>, vector<8x1xf32>
    %cst_10 = arith.constant dense<0xFF800000> : vector<8xf32>
    %11 = vector.multi_reduction <maximumf>, %7, %cst_10 [1] : vector<8x8xf32> to vector<8xf32>
    %12 = vector.shape_cast %11 : vector<8xf32> to vector<8x1xf32>
    %cst_11 = arith.constant dense<0xFF800000> : vector<8xf32>
    %13 = vector.multi_reduction <maximumf>, %9, %cst_11 [1] : vector<8x8xf32> to vector<8xf32>
    %14 = vector.shape_cast %13 : vector<8xf32> to vector<8x1xf32>
    %15 = arith.maximumf %12, %14 : vector<8x1xf32>
    %16 = arith.maximumf %10, %15 : vector<8x1xf32>
    %17 = arith.subf %10, %16 : vector<8x1xf32>
    %18 = math.exp %17 : vector<8x1xf32>
    %19 = tpu.iota {dimensions = array<i32: 0>} : vector<8x8xi32>
    %c8_i32 = arith.constant 8 : i32
    %20 = arith.muli %arg0, %c8_i32 : i32
    %21 = vector.broadcast %20 : i32 to vector<8x8xi32>
    %22 = arith.addi %19, %21 : vector<8x8xi32>
    %23 = tpu.iota {dimensions = array<i32: 1>} : vector<8x8xi32>
    %c8_i32_12 = arith.constant 8 : i32
    %24 = arith.muli %arg1, %c8_i32_12 : i32
    %25 = vector.broadcast %24 : i32 to vector<8x8xi32>
    %26 = arith.addi %23, %25 : vector<8x8xi32>
    %27 = arith.cmpi eq, %26, %22 : vector<8x8xi32>
    %28 = vector.broadcast %16 : vector<8x1xf32> to vector<8x8xf32>
    %29 = arith.subf %7, %28 : vector<8x8xf32>
    %30 = math.exp %29 : vector<8x8xf32>
    %cst_13 = arith.constant 0.000000e+00 : f32
    %31 = vector.broadcast %cst_13 : f32 to vector<8x8xf32>
    %32 = arith.select %27, %31, %30 : vector<8x8xi1>, vector<8x8xf32>
    %33 = vector.broadcast %16 : vector<8x1xf32> to vector<8x8xf32>
    %34 = arith.subf %9, %33 : vector<8x8xf32>
    %35 = math.exp %34 : vector<8x8xf32>
    %c0_14 = arith.constant 0 : index
    %c0_15 = arith.constant 0 : index
    %36 = vector.load %arg8[%c0_14, %c0_15] : memref<8x1xf32, #tpu.memory_space<vmem>>, vector<8x1xf32>
    %37 = arith.mulf %18, %36 : vector<8x1xf32>
    %cst_16 = arith.constant dense<0.000000e+00> : vector<8xf32>
    %38 = vector.multi_reduction <add>, %32, %cst_16 [1] : vector<8x8xf32> to vector<8xf32>
    %39 = vector.shape_cast %38 : vector<8xf32> to vector<8x1xf32>
    %40 = arith.addf %37, %39 : vector<8x1xf32>
    %cst_17 = arith.constant dense<0.000000e+00> : vector<8xf32>
    %41 = vector.multi_reduction <add>, %35, %cst_17 [1] : vector<8x8xf32> to vector<8xf32>
    %42 = vector.shape_cast %41 : vector<8xf32> to vector<8x1xf32>
    %43 = arith.addf %40, %42 : vector<8x1xf32>
    %c0_18 = arith.constant 0 : index
    %c0_19 = arith.constant 0 : index
    %44 = vector.load %arg8[%c0_18, %c0_19] : memref<8x1xf32, #tpu.memory_space<vmem>>, vector<8x1xf32>
    tpu.vector_store %arg8[%c0_18, %c0_19], %43 {strides = array<i32>} : memref<8x1xf32, #tpu.memory_space<vmem>>, vector<8x1xf32>,
    %c0_20 = arith.constant 0 : index
    %c0_21 = arith.constant 0 : index
    %45 = vector.load %arg7[%c0_20, %c0_21] : memref<8x1xf32, #tpu.memory_space<vmem>>, vector<8x1xf32>
    tpu.vector_store %arg7[%c0_20, %c0_21], %16 {strides = array<i32>} : memref<8x1xf32, #tpu.memory_space<vmem>>, vector<8x1xf32>,
    %c0_i32_22 = arith.constant 0 : i32
    %46 = arith.cmpi eq, %arg1, %c0_i32_22 : i32
    %47 = arith.extui %46 : i1 to i32
    %c0_i32_23 = arith.constant 0 : i32
    %48 = arith.cmpi ne, %47, %c0_i32_23 : i32
    scf.if %48 {
      %c0_24 = arith.constant 0 : index
      %c0_25 = arith.constant 0 : index
      %49 = vector.load %arg5[%c0_24, %c0_25] : memref<8x32xf32, #tpu.memory_space<vmem>>, vector<8x32xf32>
      %50 = arith.mulf %5, %49 : vector<8x32xf32>
      %cst_26 = arith.constant dense<0.000000e+00> : vector<8xf32>
      %51 = vector.multi_reduction <add>, %50, %cst_26 [1] : vector<8x32xf32> to vector<8xf32>
      %52 = vector.shape_cast %51 : vector<8xf32> to vector<8x1xf32>
      %c0_27 = arith.constant 0 : index
      %c0_28 = arith.constant 0 : index
      %53 = vector.load %arg7[%c0_27, %c0_28] : memref<8x1xf32, #tpu.memory_space<vmem>>, vector<8x1xf32>
      %c0_29 = arith.constant 0 : index
      %c0_30 = arith.constant 0 : index
      %54 = vector.load %arg8[%c0_29, %c0_30] : memref<8x1xf32, #tpu.memory_space<vmem>>, vector<8x1xf32>
      %55 = math.log %54 : vector<8x1xf32>
      %56 = arith.addf %53, %55 : vector<8x1xf32>
      %57 = arith.subf %56, %52 : vector<8x1xf32>
      %c0_31 = arith.constant 0 : index
      %c0_32 = arith.constant 0 : index
      %58 = vector.load %arg6[%c0_31, %c0_32] : memref<8x1xf32, #tpu.memory_space<vmem>>, vector<8x1xf32>
      tpu.vector_store %arg6[%c0_31, %c0_32], %57 {strides = array<i32>} : memref<8x1xf32, #tpu.memory_space<vmem>>, vector<8x1xf32>,
    } else {
    }
    return
  }
  func.func @transform_0(%arg0: i32, %arg1: i32) -> (i32, i32) {
    %c0_i32 = arith.constant 0 : i32
    %c0_i32_0 = arith.constant 0 : i32
    return %arg0, %c0_i32 : i32, i32
  }
  func.func @transform_1(%arg0: i32, %arg1: i32) -> (i32, i32) {
    %c0_i32 = arith.constant 0 : i32
    %c0_i32_0 = arith.constant 0 : i32
    return %arg1, %c0_i32 : i32, i32
  }
  func.func @transform_2(%arg0: i32, %arg1: i32) -> (i32, i32) {
    %c0_i32 = arith.constant 0 : i32
    %c0_i32_0 = arith.constant 0 : i32
    return %arg1, %c0_i32 : i32, i32
  }
  func.func @transform_3(%arg0: i32, %arg1: i32) -> (i32, i32) {
    %c0_i32 = arith.constant 0 : i32
    %c0_i32_0 = arith.constant 0 : i32
    return %arg0, %c0_i32 : i32, i32
  }
  func.func @transform_4(%arg0: i32, %arg1: i32) -> (i32, i32) {
    %c0_i32 = arith.constant 0 : i32
    %c0_i32_0 = arith.constant 0 : i32
    return %arg0, %c0_i32 : i32, i32
  }
}

</mosaic_0001>

<llo_original>
// kernel: tpu_custom_call.1
$region0: #{tpu_custom_call.1}
  #allocation0 [shape = 'u32[]', space=smem, size = 0x4, offset = 0x4, fixed_abs, tag = 'smem constant byte address 0x4 - core index']
  #allocation1 [shape = 'u32[144,128]{1,0:T(1,128)}', space=vmem, size = 0x12000, scoped, tag = 'internal scratch']
  #allocation2 [shape = 'f32[8,1]{1,0:T(8,128)}', space=vmem, size = 0x1000, scoped, tag = 'scratch operand']
  #allocation3 [shape = 'f32[8,1]{1,0:T(8,128)}', space=vmem, size = 0x1000, scoped, tag = 'scratch operand']
  %s0 = inlined_call_operand.hbm [shape: f32[8,32], index: 0, kind: input, shape index: {}]
  %s1 = inlined_call_operand.hbm [shape: f32[8,32], index: 1, kind: input, shape index: {}]
  %s2 = inlined_call_operand.hbm [shape: f32[8,32], index: 2, kind: input, shape index: {}]
  %s3 = inlined_call_operand.vmem [shape: f32[8,32], index: 3, kind: input, shape index: {}]
  %s4 = inlined_call_operand.vmem [shape: f32[8,1], index: 4, kind: output, shape index: {}]
  %s5 = sld [smem:[#allocation0]]
  $region46: #{tpu_custom_call.1} parent=0
    _
  %s7 = ssub.s32 1, %s5
  %s8 = scalar_select 0, %s7, %s5
  $region1: #{tpu_custom_call.1} parent=0
    #allocation4 [shape = 'u8[4096]{0}', space=vmem, size = 0x1000, scoped, tag = 'input window, operand 0, single buffered']
    #allocation5 [shape = 's32[1]{0}', space=sflag, size = 0x4, scoped, tag = 'scoped memory for tpu_custom_call.1']
    #allocation6 [shape = 'u8[4096]{0}', space=vmem, size = 0x1000, scoped, tag = 'input window, operand 1, single buffered']
    #allocation7 [shape = 's32[1]{0}', space=sflag, size = 0x4, scoped, tag = 'scoped memory for tpu_custom_call.1']
    #allocation8 [shape = 'u8[4096]{0}', space=vmem, size = 0x1000, scoped, tag = 'input window, operand 2, single buffered']
    %9 = vsyncpa [#allocation5], 0
    %10 = vsyncpa [#allocation7], 0
    // Predicated region
    $region2: #{tpu_custom_call.1} parent=1 // pred_check
      _
    $region3: #{tpu_custom_call.1} parent=1 // pred_check_branch
      %12 = sbr.rel (0) target = $region5
    $region4: #{tpu_custom_call.1} parent=1 // pred_region
      %s14 = ssub.s32 128, 128
      %15 = vsyncadd [#allocation5], %s14
      %s17 = sshll.u32 [#allocation4], 4
      %s18 = int_to_ptr.vmem [resolvable:$true] %s17
      %20 = dma.hbm_to_vmem [thread:$0]  %s0, 128, %s18, [#allocation5]
    $region5: #{tpu_custom_call.1} parent=1 // pred_fallthru
      _
    // Predicated region
    $region6: #{tpu_custom_call.1} parent=1 // pred_check
      _
    $region7: #{tpu_custom_call.1} parent=1 // pred_check_branch
      %22 = sbr.rel (0) target = $region9
    $region8: #{tpu_custom_call.1} parent=1 // pred_region
      %s24 = ssub.s32 128, 128
      %25 = vsyncadd [#allocation7], %s24
      %s27 = sshll.u32 [#allocation6], 4
      %s28 = int_to_ptr.vmem [resolvable:$true] %s27
      %30 = dma.hbm_to_vmem [thread:$0]  %s1, 128, %s28, [#allocation7]
    $region9: #{tpu_custom_call.1} parent=1 // pred_fallthru
      _
    // Predicated region
    $region10: #{tpu_custom_call.1} parent=1 // pred_check
      _
    $region11: #{tpu_custom_call.1} parent=1 // pred_check_branch
      %32 = sbr.rel (0) target = $region13
    $region12: #{tpu_custom_call.1} parent=1 // pred_region
      %s34 = ssub.s32 128, 128
      %35 = vsyncadd [#allocation7], %s34
      %s37 = sshll.u32 [#allocation8], 4
      %s38 = int_to_ptr.vmem [resolvable:$true] %s37
      %40 = dma.hbm_to_vmem [thread:$0]  %s2, 128, %s38, [#allocation7]
    $region13: #{tpu_custom_call.1} parent=1 // pred_fallthru
      _
    // Predicated region
    $region14: #{tpu_custom_call.1} parent=1 // pred_check
      _
    $region15: #{tpu_custom_call.1} parent=1 // pred_check_branch
      %42 = sbr.rel (0) target = $region17
    $region16: #{tpu_custom_call.1} parent=1 // pred_region
      _
    $region17: #{tpu_custom_call.1} parent=1 // pred_fallthru
      _
    // Predicated region
    $region18: #{tpu_custom_call.1} parent=1 // pred_check
      _
    $region19: #{tpu_custom_call.1} parent=1 // pred_check_branch
      %44 = sbr.rel (0) target = $region21
    $region20: #{tpu_custom_call.1} parent=1 // pred_region
      %45 = dma.done [#allocation5], 128
    $region21: #{tpu_custom_call.1} parent=1 // pred_fallthru
      _
    // Predicated region
    $region22: #{tpu_custom_call.1} parent=1 // pred_check
      _
    $region23: #{tpu_custom_call.1} parent=1 // pred_check_branch
      %47 = sbr.rel (0) target = $region25
    $region24: #{tpu_custom_call.1} parent=1 // pred_region
      %48 = dma.done [#allocation7], 128
    $region25: #{tpu_custom_call.1} parent=1 // pred_fallthru
      _
    // Predicated region
    $region26: #{tpu_custom_call.1} parent=1 // pred_check
      _
    $region27: #{tpu_custom_call.1} parent=1 // pred_check_branch
      %50 = sbr.rel (0) target = $region29
    $region28: #{tpu_custom_call.1} parent=1 // pred_region
      %51 = dma.done [#allocation7], 128
    $region29: #{tpu_custom_call.1} parent=1 // pred_fallthru
      _
    %p52 = scmp.eq.s32.totalorder 0, 0
    // Predicated region
    $region30: #{tpu_custom_call.1} parent=1 // pred_check
      %p53 = pneg %p52
    $region31: #{tpu_custom_call.1} parent=1 // pred_check_branch
      %55 = sbr.rel (%p53) target = $region33
    $region32: #{tpu_custom_call.1} parent=1 // pred_region
      %vm56 = vcmask 7168
      %57 = vst.msk [vmem:[#allocation2] sm:$0xff] %vm56, -inf
      %58 = vst.msk [vmem:[#allocation3] sm:$0xff] %vm56, 0.0
    $region33: #{tpu_custom_call.1} parent=1 // pred_fallthru
      _
    %v59 = vld [vmem:[#allocation4] sm:$0xff]
    %v60 = vmul.f32 %v59, 2.0
    %v61 = vld [vmem:[#allocation6] sm:$0xff]
    %vm62 = vcmask 261120
    %v64 = vsel %vm62, %v60, 0
    %v67 = vsel %vm62, %v61, 0
    %69 = vmatprep.subr.mxu0 0.0
    %70 = vmatpush1.xpose.msra.mxu0 %v67
    %71 = vmatprep.subr.mxu0 0.0
    %72 = vmatpush1.xpose.msra.mxu0 0.0
    %73 = vmatprep.subr.mxu0 0.0
    %74 = vmatpush1.xpose.msra.mxu0 0.0
    %75 = vmatprep.subr.mxu0 0.0
    %76 = vmatpush1.xpose.msra.mxu0 0.0
    %77 = vmatprep.subr.mxu0 0.0
    %78 = vmatpush1.xpose.msra.mxu0 0.0
    %79 = vmatprep.subr.mxu0 0.0
    %80 = vmatpush1.xpose.msra.mxu0 0.0
    %81 = vmatprep.subr.mxu0 0.0
    %82 = vmatpush1.xpose.msra.mxu0 0.0
    %83 = vmatprep.subr.mxu0 0.0
    %84 = vmatpush1.xpose.msra.mxu0 0.0
    %85 = vmatprep.subr.mxu0 0.0
    %86 = vmatpush1.xpose.msra.mxu0 0.0
    %87 = vmatprep.subr.mxu0 0.0
    %88 = vmatpush1.xpose.msra.mxu0 0.0
    %89 = vmatprep.subr.mxu0 0.0
    %90 = vmatpush1.xpose.msra.mxu0 0.0
    %91 = vmatprep.subr.mxu0 0.0
    %92 = vmatpush1.xpose.msra.mxu0 0.0
    %93 = vmatprep.subr.mxu0 0.0
    %94 = vmatpush1.xpose.msra.mxu0 0.0
    %95 = vmatprep.subr.mxu0 0.0
    %96 = vmatpush1.xpose.msra.mxu0 0.0
    %97 = vmatprep.subr.mxu0 0.0
    %98 = vmatpush1.xpose.msra.mxu0 0.0
    %99 = vmatprep.subr.mxu0 0.0
    %100 = vmatpush1.xpose.msra.mxu0 0.0
    %101 = vmatprep.subr.mxu0 0.0
    %102 = vmatpush1.xpose.msra.mxu0 0.0
    %103 = vmatprep.subr.mxu0 0.0
    %104 = vmatpush1.xpose.msra.mxu0 0.0
    %105 = vmatprep.subr.mxu0 0.0
    %106 = vmatpush1.xpose.msra.mxu0 0.0
    %107 = vmatprep.subr.mxu0 0.0
    %108 = vmatpush1.xpose.msra.mxu0 0.0
    %109 = vmatprep.subr.mxu0 0.0
    %110 = vmatpush1.xpose.msra.mxu0 0.0
    %111 = vmatprep.subr.mxu0 0.0
    %112 = vmatpush1.xpose.msra.mxu0 0.0
    %113 = vmatprep.subr.mxu0 0.0
    %114 = vmatpush1.xpose.msra.mxu0 0.0
    %115 = vmatprep.subr.mxu0 0.0
    %116 = vmatpush1.xpose.msra.mxu0 0.0
    %117 = vmatprep.subr.mxu0 0.0
    %118 = vmatpush1.xpose.msra.mxu0 0.0
    %119 = vmatprep.subr.mxu0 0.0
    %120 = vmatpush1.xpose.msra.mxu0 0.0
    %121 = vmatprep.subr.mxu0 0.0
    %122 = vmatpush1.xpose.msra.mxu0 0.0
    %123 = vmatprep.subr.mxu0 0.0
    %124 = vmatpush1.xpose.msra.mxu0 0.0
    %125 = vmatprep.subr.mxu0 0.0
    %126 = vmatpush1.xpose.msra.mxu0 0.0
    %127 = vmatprep.subr.mxu0 0.0
    %128 = vmatpush1.xpose.msra.mxu0 0.0
    %129 = vmatprep.subr.mxu0 0.0
    %130 = vmatpush1.xpose.msra.mxu0 0.0
    %131 = vmatprep.subr.mxu0 0.0
    %132 = vmatpush1.xpose.msra.mxu0 0.0
    %133 = vmatprep.mubr.f32.mxu0 0.0
    %134 = vmatmul.mubr.f32.gmra.mrb[0].mxu0 %v64
    %v135 = vpop.f32.mrb[0].mxu0
    %v136 = vadd.f32 0.0, %v135
    %v137 = vpop.f32.mrb[0].mxu0
    %138 = vdwg.mxu0
    %v139 = vld [vmem:[#allocation8] sm:$0xff]
    %v141 = vsel %vm62, %v139, 0
    %143 = vmatprep.subr.mxu0 0.0
    %144 = vmatpush1.xpose.msra.mxu0 %v141
    %145 = vmatprep.subr.mxu0 0.0
    %146 = vmatpush1.xpose.msra.mxu0 0.0
    %147 = vmatprep.subr.mxu0 0.0
    %148 = vmatpush1.xpose.msra.mxu0 0.0
    %149 = vmatprep.subr.mxu0 0.0
    %150 = vmatpush1.xpose.msra.mxu0 0.0
    %151 = vmatprep.subr.mxu0 0.0
    %152 = vmatpush1.xpose.msra.mxu0 0.0
    %153 = vmatprep.subr.mxu0 0.0
    %154 = vmatpush1.xpose.msra.mxu0 0.0
    %155 = vmatprep.subr.mxu0 0.0
    %156 = vmatpush1.xpose.msra.mxu0 0.0
    %157 = vmatprep.subr.mxu0 0.0
    %158 = vmatpush1.xpose.msra.mxu0 0.0
    %159 = vmatprep.subr.mxu0 0.0
    %160 = vmatpush1.xpose.msra.mxu0 0.0
    %161 = vmatprep.subr.mxu0 0.0
    %162 = vmatpush1.xpose.msra.mxu0 0.0
    %163 = vmatprep.subr.mxu0 0.0
    %164 = vmatpush1.xpose.msra.mxu0 0.0
    %165 = vmatprep.subr.mxu0 0.0
    %166 = vmatpush1.xpose.msra.mxu0 0.0
    %167 = vmatprep.subr.mxu0 0.0
    %168 = vmatpush1.xpose.msra.mxu0 0.0
    %169 = vmatprep.subr.mxu0 0.0
    %170 = vmatpush1.xpose.msra.mxu0 0.0
    %171 = vmatprep.subr.mxu0 0.0
    %172 = vmatpush1.xpose.msra.mxu0 0.0
    %173 = vmatprep.subr.mxu0 0.0
    %174 = vmatpush1.xpose.msra.mxu0 0.0
    %175 = vmatprep.subr.mxu0 0.0
    %176 = vmatpush1.xpose.msra.mxu0 0.0
    %177 = vmatprep.subr.mxu0 0.0
    %178 = vmatpush1.xpose.msra.mxu0 0.0
    %179 = vmatprep.subr.mxu0 0.0
    %180 = vmatpush1.xpose.msra.mxu0 0.0
    %181 = vmatprep.subr.mxu0 0.0
    %182 = vmatpush1.xpose.msra.mxu0 0.0
    %183 = vmatprep.subr.mxu0 0.0
    %184 = vmatpush1.xpose.msra.mxu0 0.0
    %185 = vmatprep.subr.mxu0 0.0
    %186 = vmatpush1.xpose.msra.mxu0 0.0
    %187 = vmatprep.subr.mxu0 0.0
    %188 = vmatpush1.xpose.msra.mxu0 0.0
    %189 = vmatprep.subr.mxu0 0.0
    %190 = vmatpush1.xpose.msra.mxu0 0.0
    %191 = vmatprep.subr.mxu0 0.0
    %192 = vmatpush1.xpose.msra.mxu0 0.0
    %193 = vmatprep.subr.mxu0 0.0
    %194 = vmatpush1.xpose.msra.mxu0 0.0
    %195 = vmatprep.subr.mxu0 0.0
    %196 = vmatpush1.xpose.msra.mxu0 0.0
    %197 = vmatprep.subr.mxu0 0.0
    %198 = vmatpush1.xpose.msra.mxu0 0.0
    %199 = vmatprep.subr.mxu0 0.0
    %200 = vmatpush1.xpose.msra.mxu0 0.0
    %201 = vmatprep.subr.mxu0 0.0
    %202 = vmatpush1.xpose.msra.mxu0 0.0
    %203 = vmatprep.subr.mxu0 0.0
    %204 = vmatpush1.xpose.msra.mxu0 0.0
    %205 = vmatprep.subr.mxu0 0.0
    %206 = vmatpush1.xpose.msra.mxu0 0.0
    %207 = vmatprep.mubr.f32.mxu0 0.0
    %208 = vmatmul.mubr.f32.gmra.mrb[0].mxu0 %v64
    %v209 = vpop.f32.mrb[0].mxu0
    %v210 = vadd.f32 0.0, %v209
    %v211 = vpop.f32.mrb[0].mxu0
    %212 = vdwg.mxu0
    %v213 = vld [vmem:[#allocation2] sm:$0xff]
    %vm214 = vcmask 64512
    %v215 = vsel %vm214, %v136, -inf
    %216 = vmax.xlane.f32.xlu0 %v215
    %v217 = vpop.xlane.xlu0 %216
    %v218 = vsel %vm214, %v210, -inf
    %219 = vmax.xlane.f32.xlu0 %v218
    %v220 = vpop.xlane.xlu0 %219
    %v221 = vmax.f32 %v217, %v220
    %v222 = vmax.f32 %v213, %v221
    %v223 = vsub.f32 %v213, %v222
    %v224 = vmul.f32 %v223, 1.442695
    %v225 = vpow.pop %v224
    %v226 = vlaneseq
    %v227 = vshrl.u32 %v226, 7
    %s228 = smul.u32 0, 8
    %v229 = vstv %s228
    %v230 = vadd.s32 %v227, %v229
    %v231 = vlaneseq
    %v232 = vand.u32 %v231, 127
    %s233 = smul.u32 0, 8
    %v234 = vstv %s233
    %v235 = vadd.s32 %v232, %v234
    %vm236 = vcmp.eq.s32.totalorder %v235, %v230
    %238 = vset.pattern.permute.xlu0 0
    %239 = vperm.xlu0 %238, %v222
    %v240 = vpop.permute.xlu0 %239
    %v242 = vsub.f32 %v136, %v240
    %v243 = vmul.f32 %v242, 1.442695
    %v244 = vpow.pop %v243
    %v245 = vsel %vm236, 0.0, %v244
    %v246 = vsub.f32 %v210, %v240
    %v247 = vmul.f32 %v246, 1.442695
    %v248 = vpow.pop %v247
    %v249 = vld [vmem:[#allocation3] sm:$0xff]
    %v250 = vmul.f32 %v225, %v249
    %v251 = vsel %vm214, %v245, 0.0
    %252 = vadd.xlane.f32.xlu0 %v251
    %v253 = vpop.xlane.xlu0 %252
    %v254 = vadd.f32 %v250, %v253
    %v255 = vsel %vm214, %v248, 0.0
    %256 = vadd.xlane.f32.xlu0 %v255
    %v257 = vpop.xlane.xlu0 %256
    %v258 = vadd.f32 %v254, %v257
    %vm259 = vcmask 7168
    %260 = vst.msk [vmem:[#allocation3] sm:$0xff] %vm259, %v258
    %261 = vst.msk [vmem:[#allocation2] sm:$0xff] %vm259, %v222
    // Predicated region
    $region34: #{tpu_custom_call.1} parent=1 // pred_check
      %p262 = pneg %p52
    $region35: #{tpu_custom_call.1} parent=1 // pred_check_branch
      %264 = sbr.rel (%p262) target = $region37
    $region36: #{tpu_custom_call.1} parent=1 // pred_region
      %v265 = vld [vmem:[%s3] sm:$0xff]
      %v266 = vmul.f32 %v60, %v265
      %v267 = vsel %vm62, %v266, 0.0
      %268 = vadd.xlane.f32.xlu0 %v267
      %v269 = vpop.xlane.xlu0 %268
      %v270 = vld [vmem:[#allocation2] sm:$0xff]
      %v271 = vld [vmem:[#allocation3] sm:$0xff]
      %v272 = vlog2.pop %v271
      %v273 = vmul.f32 %v272, 0.6931472
      %v274 = vadd.f32 %v270, %v273
      %v275 = vsub.f32 %v274, %v269
      %276 = vst.msk [vmem:[%s4] sm:$0xff] %vm259, %v275
    $region37: #{tpu_custom_call.1} parent=1 // pred_fallthru
      _
    // Predicated region
    $region38: #{tpu_custom_call.1} parent=1 // pred_check
      _
    $region39: #{tpu_custom_call.1} parent=1 // pred_check_branch
      %278 = sbr.rel (0) target = $region41
    $region40: #{tpu_custom_call.1} parent=1 // pred_region
      _
    $region41: #{tpu_custom_call.1} parent=1 // pred_fallthru
      _
    // Predicated region
    $region42: #{tpu_custom_call.1} parent=1 // pred_check
      _
    $region43: #{tpu_custom_call.1} parent=1 // pred_check_branch
      %280 = sbr.rel (0) target = $region45
    $region44: #{tpu_custom_call.1} parent=1 // pred_region
      _
    $region45: #{tpu_custom_call.1} parent=1 // pred_fallthru
      _
    %281 = vsyncpa [#allocation5], 1
    %282 = vsyncpa [#allocation7], 1

</llo_original>
